<compile_context>
chip_gen: v7x
topology: tpu7x:2x2x1
jax: 0.10.0
libtpu: 0.0.40
codegen_flags: <defaults>
</compile_context>

<pallas_src>
import numpy as np
import jax
import jax.numpy as jnp
from jax.experimental import pallas as pl
from jax.experimental.pallas import tpu as pltpu


# ------------------------------------------------------------------ operator setup (host-side glue)

def _triangle_resize_matrix(in_size: int, out_size: int) -> np.ndarray:
    """(out_size, in_size) row-stochastic matrix reproducing torchvision's bilinear
    resize with antialias=True along one axis (half-pixel centers, triangle filter
    whose support is widened by the downscale factor)."""
    scale = in_size / out_size
    s = max(scale, 1.0)
    centers = (np.arange(out_size, dtype=np.float64) + 0.5) * scale
    src = np.arange(in_size, dtype=np.float64) + 0.5
    w = np.maximum(0.0, 1.0 - np.abs((src[None, :] - centers[:, None]) / s))
    w /= w.sum(axis=1, keepdims=True)
    return w.astype(np.float32)


def _edge_pad_matrix(n: int, off: int) -> np.ndarray:
    """(n + 2*off, n) selection matrix implementing 'edge' (replicate) padding."""
    m = n + 2 * off
    idx = np.clip(np.arange(m) - off, 0, n - 1)
    P = np.zeros((m, n), dtype=np.float32)
    P[np.arange(m), idx] = 1.0
    return P


def _build_operators_np(H: int, W: int, max_sz: int):
    """Composed per-axis operators L (S,H) and R^T (W,S) for the full ResizePad pipeline."""
    w0, h0 = W, H                                          # TF.get_image_size -> (w, h)
    size = int(min(w0, h0) / (max(w0, h0) / max_sz))
    # torchvision resize with scalar size: short edge -> size, long edge = int(size*long/short)
    if w0 <= h0:
        w1, h1 = size, int(size * h0 / w0)
    else:
        h1, w1 = size, int(size * w0 / h0)
    A1 = _triangle_resize_matrix(H, h1)                    # (h1, H)
    B1 = _triangle_resize_matrix(W, w1)                    # (w1, W)

    offset = (max_sz - min(w1, h1)) // 2
    if h1 < w1:                                            # padding = [0, offset] -> pad top/bottom
        P_h, P_w = _edge_pad_matrix(h1, offset), np.eye(w1, dtype=np.float32)
        h2, w2 = h1 + 2 * offset, w1
    else:                                                  # padding = [offset, 0] -> pad left/right
        P_h, P_w = np.eye(h1, dtype=np.float32), _edge_pad_matrix(w1, offset)
        h2, w2 = h1, w1 + 2 * offset

    A2 = _triangle_resize_matrix(h2, max_sz)               # (S, h2)
    B2 = _triangle_resize_matrix(w2, max_sz)               # (S, w2)

    L = A2 @ P_h @ A1                                      # (S, H)
    R = B2 @ P_w @ B1                                      # (S, W)
    return L, R.T.copy()                                   # L: (S,H), R^T: (W,S), numpy f32


# ------------------------------------------------------------------ tuning constants (VMEM budgets)

_FUSED_K_MAX_BYTES = 8 * 1024 * 1024    # use the fused single-GEMM path if K fits here
_FUSED_ROW_BUDGET = 16 * 1024 * 1024    # budget for double-buffered (row-block in + out)
_SLAB_BUDGET = 24 * 1024 * 1024         # budget for the two-stage slab batch
_VMEM_LIMIT_BYTES = 48 * 1024 * 1024    # safe on v5e/v6e (128 MiB) and v7x (64 MiB)


def _pick_row_block(BC: int, HW: int, SS: int, xbytes: int) -> int:
    per_row = 2 * (HW * xbytes + SS * 4)                   # double-buffered input row + f32 output row
    tm = int(_FUSED_ROW_BUDGET // max(per_row, 1))
    tm = max(8, min(1024, (tm // 8) * 8))                  # multiple of 8 (sublane constraint)
    return BC if tm >= BC else tm


def _pick_slab_block(BC: int, H: int, W: int, S: int, xbytes: int) -> int:
    resident = 2 * (S * H + W * S) * 4                     # L and R^T (double-buffered, conservative)
    per_slab = 2 * (H * W * xbytes + S * S * 4) + H * S * 4
    g = int(max(1, (_SLAB_BUDGET - resident) // max(per_slab, 1)))
    return max(1, min(g, 16, BC))


# ------------------------------------------------------------------ Pallas kernels

def _fused_kernel(x_ref, k_ref, o_ref):
    # x_ref: (TM, H*W)  k_ref: (H*W, S*S)  o_ref: (TM, S*S)  -- one lane-dense GEMM on the MXU.
    x = x_ref[...].astype(jnp.float32)                     # cast in-kernel (input DMA'd in native dtype)
    o_ref[...] = jnp.dot(x, k_ref[...], preferred_element_type=jnp.float32)


def _two_stage_kernel(l_ref, rt_ref, x_ref, o_ref):
    # l_ref: (S, H)  rt_ref: (W, S)  x_ref: (G, H, W)  o_ref: (G, S, S)
    G = x_ref.shape[0]
    l = l_ref[...]
    rt = rt_ref[...]
    for g in range(G):                                     # unrolled: G slabs per grid step
        xg = x_ref[g].astype(jnp.float32)                  # (H, W), cast in-kernel
        t = jnp.dot(xg, rt, preferred_element_type=jnp.float32)      # (H, S), M = H feeds the MXU
        o_ref[g] = jnp.dot(l, t, preferred_element_type=jnp.float32)  # (S, S)


# ------------------------------------------------------------------ dispatch paths

def _resize_pad_fused(x2d: jax.Array, L_np: np.ndarray, RT_np: np.ndarray, S: int) -> jax.Array:
    BC, HW = x2d.shape
    SS = S * S
    # K[(h*W+w),(s*S+t)] = L[s,h] * R^T[w,t]  ->  Y2 = X2 @ K
    K = jnp.asarray(np.kron(L_np.T, RT_np))                # (H*W, S*S), f32
    tm = _pick_row_block(BC, HW, SS, x2d.dtype.itemsize)
    grid = (pl.cdiv(BC, tm),)
    return pl.pallas_call(
        _fused_kernel,
        out_shape=jax.ShapeDtypeStruct((BC, SS), jnp.float32),
        grid=grid,
        in_specs=[
            pl.BlockSpec((tm, HW), lambda i: (i, 0)),      # row-block of flattened images
            pl.BlockSpec((HW, SS), lambda i: (0, 0)),      # fused operator, resident
        ],
        out_specs=pl.BlockSpec((tm, SS), lambda i: (i, 0)),  # lane-dense output (last dim = S*S)
        compiler_params=pltpu.CompilerParams(
            dimension_semantics=("parallel",),
            vmem_limit_bytes=_VMEM_LIMIT_BYTES,
        ),
    )(x2d, K)


def _resize_pad_two_stage(x3d: jax.Array, L_np: np.ndarray, RT_np: np.ndarray, S: int) -> jax.Array:
    BC, H, W = x3d.shape
    L = jnp.asarray(L_np)                                  # (S, H)
    RT = jnp.asarray(RT_np)                                # (W, S)
    G = _pick_slab_block(BC, H, W, S, x3d.dtype.itemsize)
    grid = (pl.cdiv(BC, G),)
    return pl.pallas_call(
        _two_stage_kernel,
        out_shape=jax.ShapeDtypeStruct((BC, S, S), jnp.float32),
        grid=grid,
        in_specs=[
            pl.BlockSpec((S, H), lambda i: (0, 0)),        # L, resident
            pl.BlockSpec((W, S), lambda i: (0, 0)),        # R^T, resident
            pl.BlockSpec((G, H, W), lambda i: (i, 0, 0)),  # G image slabs per step (native dtype)
        ],
        out_specs=pl.BlockSpec((G, S, S), lambda i: (i, 0, 0)),
        compiler_params=pltpu.CompilerParams(
            dimension_semantics=("parallel",),
            vmem_limit_bytes=_VMEM_LIMIT_BYTES,
        ),
    )(L, RT, x3d)


def resize_pad(x: jax.Array, max_sz: int = 256, padding_mode: str = "edge",
               *, force_two_stage: bool = False) -> jax.Array:
    """Pallas implementation of ResizePad.forward for NCHW input."""
    assert padding_mode == "edge"  # TODO(synk): other torchvision padding modes not implemented
    B, C, H, W = x.shape
    S = int(max_sz)
    BC = B * C
    L_np, RT_np = _build_operators_np(H, W, S)

    fused_k_bytes = H * W * S * S * 4
    if (not force_two_stage) and fused_k_bytes <= _FUSED_K_MAX_BYTES:
        out = _resize_pad_fused(x.reshape(BC, H * W), L_np, RT_np, S)
    else:
        out = _resize_pad_two_stage(x.reshape(BC, H, W), L_np, RT_np, S)

    out = out.reshape(B, C, S, S)
    if jnp.issubdtype(x.dtype, jnp.integer):
        out = jnp.round(out)                               # match torchvision rounding on int images
    return out.astype(x.dtype)


# ------------------------------------------------------------------ demo / self-check

if __name__ == "__main__":
    B, C, MAX_SZ = 2, 4, 32

    # Case 1: landscape (h < w) -> top/bottom pad branch, fused single-GEMM path.
    H1, W1 = 10, 14
    x1 = jax.random.uniform(jax.random.PRNGKey(0), (B, C, H1, W1), dtype=jnp.float32)
    y1 = jax.block_until_ready(resize_pad(x1, max_sz=MAX_SZ, padding_mode="edge"))
    L1, RT1 = _build_operators_np(H1, W1, MAX_SZ)
    ref1 = jnp.einsum("sh,bchw,wt->bcst", jnp.asarray(L1), x1, jnp.asarray(RT1))
    assert y1.shape == (B, C, MAX_SZ, MAX_SZ)
    assert y1.dtype == x1.dtype
    np.testing.assert_allclose(np.asarray(y1), np.asarray(ref1), rtol=1e-4, atol=1e-5)

    # Case 2: portrait (w < h) -> left/right pad branch; force the two-stage (large-image) path.
    H2, W2 = 14, 10
    x2 = jax.random.uniform(jax.random.PRNGKey(1), (B, C, H2, W2), dtype=jnp.float32)
    y2 = jax.block_until_ready(resize_pad(x2, max_sz=MAX_SZ, padding_mode="edge",
                                          force_two_stage=True))
    L2, RT2 = _build_operators_np(H2, W2, MAX_SZ)
    ref2 = jnp.einsum("sh,bchw,wt->bcst", jnp.asarray(L2), x2, jnp.asarray(RT2))
    assert y2.shape == (B, C, MAX_SZ, MAX_SZ)
    assert y2.dtype == x2.dtype
    np.testing.assert_allclose(np.asarray(y2), np.asarray(ref2), rtol=1e-4, atol=1e-5)

    print("KERNEL_OK")
</pallas_src>

<mosaic_0001>
module attributes {stable_mosaic.version = 11 : i64} {
  func.func @_fused_kernel(%arg0: i32, %arg1: memref<8x140xf32, #tpu.memory_space<vmem>>, %arg2: memref<140x1024xf32, #tpu.memory_space<vmem>>, %arg3: memref<8x1024xf32, #tpu.memory_space<vmem>>) attributes {dimension_semantics = [#tpu.dimension_semantics<parallel>], iteration_bounds = array<i64: 1>, scalar_prefetch = 0 : i64, scratch_operands = 0 : i64, tpu.core_type = #tpu.core_type<tc>, window_params = [{transform_indices = @transform_0, window_bounds = array<i64: 8, 140>}, {pipeline_mode = #tpu.pipeline_mode<synchronous>, transform_indices = @transform_1, window_bounds = array<i64: 140, 1024>}, {transform_indices = @transform_2, window_bounds = array<i64: 8, 1024>}]} {
    %c0 = arith.constant 0 : index
    %c0_0 = arith.constant 0 : index
    %0 = vector.load %arg1[%c0, %c0_0] : memref<8x140xf32, #tpu.memory_space<vmem>>, vector<8x140xf32>
    %c0_1 = arith.constant 0 : index
    %c0_2 = arith.constant 0 : index
    %1 = vector.load %arg2[%c0_1, %c0_2] : memref<140x1024xf32, #tpu.memory_space<vmem>>, vector<140x1024xf32>
    %cst = arith.constant dense<0.000000e+00> : vector<8x1024xf32>
    %2 = tpu.matmul %0, %1, %cst {dimension_numbers = #tpu.dot_dimension_numbers<[1], [0], [0], [1], [0, 0, 1, 1], [], []>} : vector<8x140xf32>, vector<140x1024xf32>, vector<8x1024xf32> -> vector<8x1024xf32>
    %c0_3 = arith.constant 0 : index
    %c0_4 = arith.constant 0 : index
    %3 = vector.load %arg3[%c0_3, %c0_4] : memref<8x1024xf32, #tpu.memory_space<vmem>>, vector<8x1024xf32>
    tpu.vector_store %arg3[%c0_3, %c0_4], %2 {strides = array<i32>} : memref<8x1024xf32, #tpu.memory_space<vmem>>, vector<8x1024xf32>,
    return
  }
  func.func @transform_0(%arg0: i32) -> (i32, i32) {
    %c0_i32 = arith.constant 0 : i32
    %c0_i32_0 = arith.constant 0 : i32
    return %arg0, %c0_i32 : i32, i32
  }
  func.func @transform_1(%arg0: i32) -> (i32, i32) {
    %c0_i32 = arith.constant 0 : i32
    %c0_i32_0 = arith.constant 0 : i32
    %c0_i32_1 = arith.constant 0 : i32
    return %c0_i32, %c0_i32_0 : i32, i32
  }
  func.func @transform_2(%arg0: i32) -> (i32, i32) {
    %c0_i32 = arith.constant 0 : i32
    %c0_i32_0 = arith.constant 0 : i32
    return %arg0, %c0_i32 : i32, i32
  }
}

</mosaic_0001>

<llo_original>
// kernel: tpu_custom_call.1
$region0: #{tpu_custom_call.1}
  #allocation0 [shape = 'u32[]', space=smem, size = 0x4, offset = 0x4, fixed_abs, tag = 'smem constant byte address 0x4 - core index']
  #allocation1 [shape = 'u32[144,128]{1,0:T(1,128)}', space=vmem, size = 0x12000, scoped, tag = 'internal scratch']
  %s0 = inlined_call_operand.hbm [shape: f32[8,140], index: 0, kind: input, shape index: {}]
  %s1 = inlined_call_operand.hbm [shape: f32[140,1024], index: 1, kind: input, shape index: {}]
  %s2 = inlined_call_operand.hbm [shape: f32[8,1024], index: 2, kind: output, shape index: {}]
  %s3 = sld [smem:[#allocation0]]
  $region26: #{tpu_custom_call.1} parent=0
    _
  %s5 = ssub.s32 1, %s3
  %s6 = scalar_select 0, %s5, %s3
  $region1: #{tpu_custom_call.1} parent=0
    #allocation2 [shape = 'u8[8192]{0}', space=vmem, size = 0x2000, scoped, tag = 'input window, operand 0, single buffered']
    #allocation3 [shape = 's32[1]{0}', space=sflag, size = 0x4, scoped, tag = 'scoped memory for tpu_custom_call.1']
    #allocation4 [shape = 's32[1]{0}', space=sflag, size = 0x4, scoped, tag = 'scoped memory for tpu_custom_call.1']
    #allocation5 [shape = 'u8[589824]{0}', space=vmem, size = 0x90000, scoped, tag = 'input window, operand 1, single buffered']
    #allocation6 [shape = 's32[1]{0}', space=sflag, size = 0x4, scoped, tag = 'scoped memory for tpu_custom_call.1']
    #allocation7 [shape = 'u8[32768]{0}', space=vmem, size = 0x8000, scoped, tag = 'output window, operand 0, single buffered']
    %7 = vsyncpa [#allocation3], 0
    %8 = vsyncpa [#allocation6], 0
    %9 = vsyncpa [#allocation4], 0
    // Predicated region
    $region2: #{tpu_custom_call.1} parent=1 // pred_check
      _
    $region3: #{tpu_custom_call.1} parent=1 // pred_check_branch
      %11 = sbr.rel (0) target = $region5
    $region4: #{tpu_custom_call.1} parent=1 // pred_region
      %s13 = ssub.s32 256, 256
      %14 = vsyncadd [#allocation3], %s13
      %s16 = sshll.u32 [#allocation2], 4
      %s17 = int_to_ptr.vmem [resolvable:$true] %s16
      %19 = dma.hbm_to_vmem [thread:$0]  %s0, 256, %s17, [#allocation3]
    $region5: #{tpu_custom_call.1} parent=1 // pred_fallthru
      _
    // Predicated region
    $region6: #{tpu_custom_call.1} parent=1 // pred_check
      _
    $region7: #{tpu_custom_call.1} parent=1 // pred_check_branch
      %21 = sbr.rel (0) target = $region9
    $region8: #{tpu_custom_call.1} parent=1 // pred_region
      %s23 = ssub.s32 18432, 18432
      %24 = vsyncadd [#allocation6], %s23
      %s25 = sshll.u32 [#allocation5], 4
      %s26 = int_to_ptr.vmem [resolvable:$true] %s25
      %31 = dma.hbm_to_vmem [thread:$0]  %s1, 18432, %s26, [#allocation6], 1024, 1024, 64
    $region9: #{tpu_custom_call.1} parent=1 // pred_fallthru
      _
    // Predicated region
    $region10: #{tpu_custom_call.1} parent=1 // pred_check
      _
    $region11: #{tpu_custom_call.1} parent=1 // pred_check_branch
      %33 = sbr.rel (0) target = $region13
    $region12: #{tpu_custom_call.1} parent=1 // pred_region
      %34 = dma.done [#allocation3], 256
    $region13: #{tpu_custom_call.1} parent=1 // pred_fallthru
      _
    // Predicated region
    $region14: #{tpu_custom_call.1} parent=1 // pred_check
      _
    $region15: #{tpu_custom_call.1} parent=1 // pred_check_branch
      %36 = sbr.rel (0) target = $region17
    $region16: #{tpu_custom_call.1} parent=1 // pred_region
      %37 = dma.done [#allocation6], 18432
    $region17: #{tpu_custom_call.1} parent=1 // pred_fallthru
      _
    %v38 = vld [vmem:[#allocation2] sm:$0xff]
    %v39 = vld [vmem:[#allocation2 + $0x8] sm:$0xff]
    %v40 = vld [vmem:[#allocation5] sm:$0xff]
    %v41 = vld [vmem:[#allocation5 + $0x8] sm:$0xff]
    %v42 = vld [vmem:[#allocation5 + $0x10] sm:$0xff]
    %v43 = vld [vmem:[#allocation5 + $0x18] sm:$0xff]
    %v44 = vld [vmem:[#allocation5 + $0x20] sm:$0xff]
    %v45 = vld [vmem:[#allocation5 + $0x28] sm:$0xff]
    %v46 = vld [vmem:[#allocation5 + $0x30] sm:$0xff]
    %v47 = vld [vmem:[#allocation5 + $0x38] sm:$0xff]
    %v48 = vld [vmem:[#allocation5 + $0x40] sm:$0xff]
    %v49 = vld [vmem:[#allocation5 + $0x48] sm:$0xff]
    %v50 = vld [vmem:[#allocation5 + $0x50] sm:$0xff]
    %v51 = vld [vmem:[#allocation5 + $0x58] sm:$0xff]
    %v52 = vld [vmem:[#allocation5 + $0x60] sm:$0xff]
    %v53 = vld [vmem:[#allocation5 + $0x68] sm:$0xff]
    %v54 = vld [vmem:[#allocation5 + $0x70] sm:$0xff]
    %v55 = vld [vmem:[#allocation5 + $0x78] sm:$0xff]
    %v56 = vld [vmem:[#allocation5 + $0x80] sm:$0xff]
    %v57 = vld [vmem:[#allocation5 + $0x88] sm:$0xff]
    %v58 = vld [vmem:[#allocation5 + $0x90] sm:$0xff]
    %v59 = vld [vmem:[#allocation5 + $0x98] sm:$0xff]
    %v60 = vld [vmem:[#allocation5 + $0xa0] sm:$0xff]
    %v61 = vld [vmem:[#allocation5 + $0xa8] sm:$0xff]
    %v62 = vld [vmem:[#allocation5 + $0xb0] sm:$0xff]
    %v63 = vld [vmem:[#allocation5 + $0xb8] sm:$0xff]
    %v64 = vld [vmem:[#allocation5 + $0xc0] sm:$0xff]
    %v65 = vld [vmem:[#allocation5 + $0xc8] sm:$0xff]
    %v66 = vld [vmem:[#allocation5 + $0xd0] sm:$0xff]
    %v67 = vld [vmem:[#allocation5 + $0xd8] sm:$0xff]
    %v68 = vld [vmem:[#allocation5 + $0xe0] sm:$0xff]
    %v69 = vld [vmem:[#allocation5 + $0xe8] sm:$0xff]
    %v70 = vld [vmem:[#allocation5 + $0xf0] sm:$0xff]
    %v71 = vld [vmem:[#allocation5 + $0xf8] sm:$0xff]
    %v72 = vld [vmem:[#allocation5 + $0x100] sm:$0xff]
    %v73 = vld [vmem:[#allocation5 + $0x108] sm:$0xff]
    %v74 = vld [vmem:[#allocation5 + $0x110] sm:$0xff]
    %v75 = vld [vmem:[#allocation5 + $0x118] sm:$0xff]
    %v76 = vld [vmem:[#allocation5 + $0x120] sm:$0xff]
    %v77 = vld [vmem:[#allocation5 + $0x128] sm:$0xff]
    %v78 = vld [vmem:[#allocation5 + $0x130] sm:$0xff]
    %v79 = vld [vmem:[#allocation5 + $0x138] sm:$0xff]
    %v80 = vld [vmem:[#allocation5 + $0x140] sm:$0xff]
    %v81 = vld [vmem:[#allocation5 + $0x148] sm:$0xff]
    %v82 = vld [vmem:[#allocation5 + $0x150] sm:$0xff]
    %v83 = vld [vmem:[#allocation5 + $0x158] sm:$0xff]
    %v84 = vld [vmem:[#allocation5 + $0x160] sm:$0xff]
    %v85 = vld [vmem:[#allocation5 + $0x168] sm:$0xff]
    %v86 = vld [vmem:[#allocation5 + $0x170] sm:$0xff]
    %v87 = vld [vmem:[#allocation5 + $0x178] sm:$0xff]
    %v88 = vld [vmem:[#allocation5 + $0x180] sm:$0xff]
    %v89 = vld [vmem:[#allocation5 + $0x188] sm:$0xff]
    %v90 = vld [vmem:[#allocation5 + $0x190] sm:$0xff]
    %v91 = vld [vmem:[#allocation5 + $0x198] sm:$0xff]
    %v92 = vld [vmem:[#allocation5 + $0x1a0] sm:$0xff]
    %v93 = vld [vmem:[#allocation5 + $0x1a8] sm:$0xff]
    %v94 = vld [vmem:[#allocation5 + $0x1b0] sm:$0xff]
    %v95 = vld [vmem:[#allocation5 + $0x1b8] sm:$0xff]
    %v96 = vld [vmem:[#allocation5 + $0x1c0] sm:$0xff]
    %v97 = vld [vmem:[#allocation5 + $0x1c8] sm:$0xff]
    %v98 = vld [vmem:[#allocation5 + $0x1d0] sm:$0xff]
    %v99 = vld [vmem:[#allocation5 + $0x1d8] sm:$0xff]
    %v100 = vld [vmem:[#allocation5 + $0x1e0] sm:$0xff]
    %v101 = vld [vmem:[#allocation5 + $0x1e8] sm:$0xff]
    %v102 = vld [vmem:[#allocation5 + $0x1f0] sm:$0xff]
    %v103 = vld [vmem:[#allocation5 + $0x1f8] sm:$0xff]
    %v104 = vld [vmem:[#allocation5 + $0x200] sm:$0xff]
    %v105 = vld [vmem:[#allocation5 + $0x208] sm:$0xff]
    %v106 = vld [vmem:[#allocation5 + $0x210] sm:$0xff]
    %v107 = vld [vmem:[#allocation5 + $0x218] sm:$0xff]
    %v108 = vld [vmem:[#allocation5 + $0x220] sm:$0xff]
    %v109 = vld [vmem:[#allocation5 + $0x228] sm:$0xff]
    %v110 = vld [vmem:[#allocation5 + $0x230] sm:$0xff]
    %v111 = vld [vmem:[#allocation5 + $0x238] sm:$0xff]
    %v112 = vld [vmem:[#allocation5 + $0x240] sm:$0xff]
    %v113 = vld [vmem:[#allocation5 + $0x248] sm:$0xff]
    %v114 = vld [vmem:[#allocation5 + $0x250] sm:$0xff]
    %v115 = vld [vmem:[#allocation5 + $0x258] sm:$0xff]
    %v116 = vld [vmem:[#allocation5 + $0x260] sm:$0xff]
    %v117 = vld [vmem:[#allocation5 + $0x268] sm:$0xff]
    %v118 = vld [vmem:[#allocation5 + $0x270] sm:$0xff]
    %v119 = vld [vmem:[#allocation5 + $0x278] sm:$0xff]
    %v120 = vld [vmem:[#allocation5 + $0x280] sm:$0xff]
    %v121 = vld [vmem:[#allocation5 + $0x288] sm:$0xff]
    %v122 = vld [vmem:[#allocation5 + $0x290] sm:$0xff]
    %v123 = vld [vmem:[#allocation5 + $0x298] sm:$0xff]
    %v124 = vld [vmem:[#allocation5 + $0x2a0] sm:$0xff]
    %v125 = vld [vmem:[#allocation5 + $0x2a8] sm:$0xff]
    %v126 = vld [vmem:[#allocation5 + $0x2b0] sm:$0xff]
    %v127 = vld [vmem:[#allocation5 + $0x2b8] sm:$0xff]
    %v128 = vld [vmem:[#allocation5 + $0x2c0] sm:$0xff]
    %v129 = vld [vmem:[#allocation5 + $0x2c8] sm:$0xff]
    %v130 = vld [vmem:[#allocation5 + $0x2d0] sm:$0xff]
    %v131 = vld [vmem:[#allocation5 + $0x2d8] sm:$0xff]
    %v132 = vld [vmem:[#allocation5 + $0x2e0] sm:$0xff]
    %v133 = vld [vmem:[#allocation5 + $0x2e8] sm:$0xff]
    %v134 = vld [vmem:[#allocation5 + $0x2f0] sm:$0xff]
    %v135 = vld [vmem:[#allocation5 + $0x2f8] sm:$0xff]
    %v136 = vld [vmem:[#allocation5 + $0x300] sm:$0xff]
    %v137 = vld [vmem:[#allocation5 + $0x308] sm:$0xff]
    %v138 = vld [vmem:[#allocation5 + $0x310] sm:$0xff]
    %v139 = vld [vmem:[#allocation5 + $0x318] sm:$0xff]
    %v140 = vld [vmem:[#allocation5 + $0x320] sm:$0xff]
    %v141 = vld [vmem:[#allocation5 + $0x328] sm:$0xff]
    %v142 = vld [vmem:[#allocation5 + $0x330] sm:$0xff]
    %v143 = vld [vmem:[#allocation5 + $0x338] sm:$0xff]
    %v144 = vld [vmem:[#allocation5 + $0x340] sm:$0xff]
    %v145 = vld [vmem:[#allocation5 + $0x348] sm:$0xff]
    %v146 = vld [vmem:[#allocation5 + $0x350] sm:$0xff]
    %v147 = vld [vmem:[#allocation5 + $0x358] sm:$0xff]
    %v148 = vld [vmem:[#allocation5 + $0x360] sm:$0xff]
    %v149 = vld [vmem:[#allocation5 + $0x368] sm:$0xff]
    %v150 = vld [vmem:[#allocation5 + $0x370] sm:$0xff]
    %v151 = vld [vmem:[#allocation5 + $0x378] sm:$0xff]
    %v152 = vld [vmem:[#allocation5 + $0x380] sm:$0xff]
    %v153 = vld [vmem:[#allocation5 + $0x388] sm:$0xff]
    %v154 = vld [vmem:[#allocation5 + $0x390] sm:$0xff]
    %v155 = vld [vmem:[#allocation5 + $0x398] sm:$0xff]
    %v156 = vld [vmem:[#allocation5 + $0x3a0] sm:$0xff]
    %v157 = vld [vmem:[#allocation5 + $0x3a8] sm:$0xff]
    %v158 = vld [vmem:[#allocation5 + $0x3b0] sm:$0xff]
    %v159 = vld [vmem:[#allocation5 + $0x3b8] sm:$0xff]
    %v160 = vld [vmem:[#allocation5 + $0x3c0] sm:$0xff]
    %v161 = vld [vmem:[#allocation5 + $0x3c8] sm:$0xff]
    %v162 = vld [vmem:[#allocation5 + $0x3d0] sm:$0xff]
    %v163 = vld [vmem:[#allocation5 + $0x3d8] sm:$0xff]
    %v164 = vld [vmem:[#allocation5 + $0x3e0] sm:$0xff]
    %v165 = vld [vmem:[#allocation5 + $0x3e8] sm:$0xff]
    %v166 = vld [vmem:[#allocation5 + $0x3f0] sm:$0xff]
    %v167 = vld [vmem:[#allocation5 + $0x3f8] sm:$0xff]
    %v168 = vld [vmem:[#allocation5 + $0x400] sm:$0xff]
    %v169 = vld [vmem:[#allocation5 + $0x408] sm:$0xff]
    %v170 = vld [vmem:[#allocation5 + $0x410] sm:$0xff]
    %v171 = vld [vmem:[#allocation5 + $0x418] sm:$0xff]
    %v172 = vld [vmem:[#allocation5 + $0x420] sm:$0xff]
    %v173 = vld [vmem:[#allocation5 + $0x428] sm:$0xff]
    %v174 = vld [vmem:[#allocation5 + $0x430] sm:$0xff]
    %v175 = vld [vmem:[#allocation5 + $0x438] sm:$0xff]
    %v176 = vld [vmem:[#allocation5 + $0x440] sm:$0xf]
    %v177 = vld [vmem:[#allocation5 + $0x448] sm:$0xf]
    %v178 = vld [vmem:[#allocation5 + $0x450] sm:$0xf]
    %v179 = vld [vmem:[#allocation5 + $0x458] sm:$0xf]
    %v180 = vld [vmem:[#allocation5 + $0x460] sm:$0xf]
    %v181 = vld [vmem:[#allocation5 + $0x468] sm:$0xf]
    %v182 = vld [vmem:[#allocation5 + $0x470] sm:$0xf]
    %v183 = vld [vmem:[#allocation5 + $0x478] sm:$0xf]
    %vm184 = vcmask 97280
    %v186 = vsel %vm184, %v39, 0
    %vm188 = vcmask 1043456
    %v190 = vsel %vm188, %v176, 0
    %v193 = vsel %vm188, %v177, 0
    %v196 = vsel %vm188, %v178, 0
    %v199 = vsel %vm188, %v179, 0
    %v202 = vsel %vm188, %v180, 0
    %v205 = vsel %vm188, %v181, 0
    %v208 = vsel %vm188, %v182, 0
    %v211 = vsel %vm188, %v183, 0
    %213 = vmatprep.subr.mxu0 %v41
    %214 = vmatpush1.msra.mxu0 %v40
    %215 = vmatprep.subr.mxu0 %v49
    %216 = vmatpush1.msra.mxu0 %v48
    %217 = vmatprep.subr.mxu0 %v57
    %218 = vmatpush1.msra.mxu0 %v56
    %219 = vmatprep.subr.mxu0 %v65
    %220 = vmatpush1.msra.mxu0 %v64
    %221 = vmatprep.subr.mxu0 %v73
    %222 = vmatpush1.msra.mxu0 %v72
    %223 = vmatprep.subr.mxu0 %v81
    %224 = vmatpush1.msra.mxu0 %v80
    %225 = vmatprep.subr.mxu0 %v89
    %226 = vmatpush1.msra.mxu0 %v88
    %227 = vmatprep.subr.mxu0 %v97
    %228 = vmatpush1.msra.mxu0 %v96
    %229 = vmatprep.subr.mxu0 %v105
    %230 = vmatpush1.msra.mxu0 %v104
    %231 = vmatprep.subr.mxu0 %v113
    %232 = vmatpush1.msra.mxu0 %v112
    %233 = vmatprep.subr.mxu0 %v121
    %234 = vmatpush1.msra.mxu0 %v120
    %235 = vmatprep.subr.mxu0 %v129
    %236 = vmatpush1.msra.mxu0 %v128
    %237 = vmatprep.subr.mxu0 %v137
    %238 = vmatpush1.msra.mxu0 %v136
    %239 = vmatprep.subr.mxu0 %v145
    %240 = vmatpush1.msra.mxu0 %v144
    %241 = vmatprep.subr.mxu0 %v153
    %242 = vmatpush1.msra.mxu0 %v152
    %243 = vmatprep.subr.mxu0 %v161
    %244 = vmatpush1.msra.mxu0 %v160
    %245 = vmatprep.subr.mxu0 %v169
    %246 = vmatpush1.msra.mxu0 %v168
    %247 = vmatprep.subr.mxu0 %v193
    %248 = vmatpush1.msra.mxu0 %v190
    %249 = vmatprep.subr.mxu0 0.0
    %250 = vmatpush1.msra.mxu0 0.0
    %251 = vmatprep.subr.mxu0 0.0
    %252 = vmatpush1.msra.mxu0 0.0
    %253 = vmatprep.subr.mxu0 0.0
    %254 = vmatpush1.msra.mxu0 0.0
    %255 = vmatprep.subr.mxu0 0.0
    %256 = vmatpush1.msra.mxu0 0.0
    %257 = vmatprep.subr.mxu0 0.0
    %258 = vmatpush1.msra.mxu0 0.0
    %259 = vmatprep.subr.mxu0 0.0
    %260 = vmatpush1.msra.mxu0 0.0
    %261 = vmatprep.subr.mxu0 0.0
    %262 = vmatpush1.msra.mxu0 0.0
    %263 = vmatprep.subr.mxu0 0.0
    %264 = vmatpush1.msra.mxu0 0.0
    %265 = vmatprep.subr.mxu0 0.0
    %266 = vmatpush1.msra.mxu0 0.0
    %267 = vmatprep.subr.mxu0 0.0
    %268 = vmatpush1.msra.mxu0 0.0
    %269 = vmatprep.subr.mxu0 0.0
    %270 = vmatpush1.msra.mxu0 0.0
    %271 = vmatprep.subr.mxu0 0.0
    %272 = vmatpush1.msra.mxu0 0.0
    %273 = vmatprep.subr.mxu0 0.0
    %274 = vmatpush1.msra.mxu0 0.0
    %275 = vmatprep.subr.mxu0 0.0
    %276 = vmatpush1.msra.mxu0 0.0
    %277 = vmatprep.mubr.f32.mxu0 %v186
    %278 = vmatmul.mubr.f32.gmra.mrb[0].mxu0 %v38
    %v279 = vpop.f32.mrb[0].mxu0
    %v280 = vadd.f32 0.0, %v279
    %v281 = vpop.f32.mrb[0].mxu0
    %v282 = vadd.f32 0.0, %v281
    %283 = vdwg.mxu0
    %284 = vmatprep.subr.mxu0 %v43
    %285 = vmatpush1.msra.mxu0 %v42
    %286 = vmatprep.subr.mxu0 %v51
    %287 = vmatpush1.msra.mxu0 %v50
    %288 = vmatprep.subr.mxu0 %v59
    %289 = vmatpush1.msra.mxu0 %v58
    %290 = vmatprep.subr.mxu0 %v67
    %291 = vmatpush1.msra.mxu0 %v66
    %292 = vmatprep.subr.mxu0 %v75
    %293 = vmatpush1.msra.mxu0 %v74
    %294 = vmatprep.subr.mxu0 %v83
    %295 = vmatpush1.msra.mxu0 %v82
    %296 = vmatprep.subr.mxu0 %v91
    %297 = vmatpush1.msra.mxu0 %v90
    %298 = vmatprep.subr.mxu0 %v99
    %299 = vmatpush1.msra.mxu0 %v98
    %300 = vmatprep.subr.mxu0 %v107
    %301 = vmatpush1.msra.mxu0 %v106
    %302 = vmatprep.subr.mxu0 %v115
    %303 = vmatpush1.msra.mxu0 %v114
    %304 = vmatprep.subr.mxu0 %v123
    %305 = vmatpush1.msra.mxu0 %v122
    %306 = vmatprep.subr.mxu0 %v131
    %307 = vmatpush1.msra.mxu0 %v130
    %308 = vmatprep.subr.mxu0 %v139
    %309 = vmatpush1.msra.mxu0 %v138
    %310 = vmatprep.subr.mxu0 %v147
    %311 = vmatpush1.msra.mxu0 %v146
    %312 = vmatprep.subr.mxu0 %v155
    %313 = vmatpush1.msra.mxu0 %v154
    %314 = vmatprep.subr.mxu0 %v163
    %315 = vmatpush1.msra.mxu0 %v162
    %316 = vmatprep.subr.mxu0 %v171
    %317 = vmatpush1.msra.mxu0 %v170
    %318 = vmatprep.subr.mxu0 %v199
    %319 = vmatpush1.msra.mxu0 %v196
    %320 = vmatprep.subr.mxu0 0.0
    %321 = vmatpush1.msra.mxu0 0.0
    %322 = vmatprep.subr.mxu0 0.0
    %323 = vmatpush1.msra.mxu0 0.0
    %324 = vmatprep.subr.mxu0 0.0
    %325 = vmatpush1.msra.mxu0 0.0
    %326 = vmatprep.subr.mxu0 0.0
    %327 = vmatpush1.msra.mxu0 0.0
    %328 = vmatprep.subr.mxu0 0.0
    %329 = vmatpush1.msra.mxu0 0.0
    %330 = vmatprep.subr.mxu0 0.0
    %331 = vmatpush1.msra.mxu0 0.0
    %332 = vmatprep.subr.mxu0 0.0
    %333 = vmatpush1.msra.mxu0 0.0
    %334 = vmatprep.subr.mxu0 0.0
    %335 = vmatpush1.msra.mxu0 0.0
    %336 = vmatprep.subr.mxu0 0.0
    %337 = vmatpush1.msra.mxu0 0.0
    %338 = vmatprep.subr.mxu0 0.0
    %339 = vmatpush1.msra.mxu0 0.0
    %340 = vmatprep.subr.mxu0 0.0
    %341 = vmatpush1.msra.mxu0 0.0
    %342 = vmatprep.subr.mxu0 0.0
    %343 = vmatpush1.msra.mxu0 0.0
    %344 = vmatprep.subr.mxu0 0.0
    %345 = vmatpush1.msra.mxu0 0.0
    %346 = vmatprep.subr.mxu0 0.0
    %347 = vmatpush1.msra.mxu0 0.0
    %348 = vmatprep.mubr.f32.mxu0 %v186
    %349 = vmatmul.mubr.f32.gmra.mrb[0].mxu0 %v38
    %v350 = vpop.f32.mrb[0].mxu0
    %v351 = vadd.f32 0.0, %v350
    %v352 = vpop.f32.mrb[0].mxu0
    %v353 = vadd.f32 0.0, %v352
    %354 = vdwg.mxu0
    %355 = vmatprep.subr.mxu0 %v45
    %356 = vmatpush1.msra.mxu0 %v44
    %357 = vmatprep.subr.mxu0 %v53
    %358 = vmatpush1.msra.mxu0 %v52
    %359 = vmatprep.subr.mxu0 %v61
    %360 = vmatpush1.msra.mxu0 %v60
    %361 = vmatprep.subr.mxu0 %v69
    %362 = vmatpush1.msra.mxu0 %v68
    %363 = vmatprep.subr.mxu0 %v77
    %364 = vmatpush1.msra.mxu0 %v76
    %365 = vmatprep.subr.mxu0 %v85
    %366 = vmatpush1.msra.mxu0 %v84
    %367 = vmatprep.subr.mxu0 %v93
    %368 = vmatpush1.msra.mxu0 %v92
    %369 = vmatprep.subr.mxu0 %v101
    %370 = vmatpush1.msra.mxu0 %v100
    %371 = vmatprep.subr.mxu0 %v109
    %372 = vmatpush1.msra.mxu0 %v108
    %373 = vmatprep.subr.mxu0 %v117
    %374 = vmatpush1.msra.mxu0 %v116
    %375 = vmatprep.subr.mxu0 %v125
    %376 = vmatpush1.msra.mxu0 %v124
    %377 = vmatprep.subr.mxu0 %v133
    %378 = vmatpush1.msra.mxu0 %v132
    %379 = vmatprep.subr.mxu0 %v141
    %380 = vmatpush1.msra.mxu0 %v140
    %381 = vmatprep.subr.mxu0 %v149
    %382 = vmatpush1.msra.mxu0 %v148
    %383 = vmatprep.subr.mxu0 %v157
    %384 = vmatpush1.msra.mxu0 %v156
    %385 = vmatprep.subr.mxu0 %v165
    %386 = vmatpush1.msra.mxu0 %v164
    %387 = vmatprep.subr.mxu0 %v173
    %388 = vmatpush1.msra.mxu0 %v172
    %389 = vmatprep.subr.mxu0 %v205
    %390 = vmatpush1.msra.mxu0 %v202
    %391 = vmatprep.subr.mxu0 0.0
    %392 = vmatpush1.msra.mxu0 0.0
    %393 = vmatprep.subr.mxu0 0.0
    %394 = vmatpush1.msra.mxu0 0.0
    %395 = vmatprep.subr.mxu0 0.0
    %396 = vmatpush1.msra.mxu0 0.0
    %397 = vmatprep.subr.mxu0 0.0
    %398 = vmatpush1.msra.mxu0 0.0
    %399 = vmatprep.subr.mxu0 0.0
    %400 = vmatpush1.msra.mxu0 0.0
    %401 = vmatprep.subr.mxu0 0.0
    %402 = vmatpush1.msra.mxu0 0.0
    %403 = vmatprep.subr.mxu0 0.0
    %404 = vmatpush1.msra.mxu0 0.0
    %405 = vmatprep.subr.mxu0 0.0
    %406 = vmatpush1.msra.mxu0 0.0
    %407 = vmatprep.subr.mxu0 0.0
    %408 = vmatpush1.msra.mxu0 0.0
    %409 = vmatprep.subr.mxu0 0.0
    %410 = vmatpush1.msra.mxu0 0.0
    %411 = vmatprep.subr.mxu0 0.0
    %412 = vmatpush1.msra.mxu0 0.0
    %413 = vmatprep.subr.mxu0 0.0
    %414 = vmatpush1.msra.mxu0 0.0
    %415 = vmatprep.subr.mxu0 0.0
    %416 = vmatpush1.msra.mxu0 0.0
    %417 = vmatprep.subr.mxu0 0.0
    %418 = vmatpush1.msra.mxu0 0.0
    %419 = vmatprep.mubr.f32.mxu0 %v186
    %420 = vmatmul.mubr.f32.gmra.mrb[0].mxu0 %v38
    %v421 = vpop.f32.mrb[0].mxu0
    %v422 = vadd.f32 0.0, %v421
    %v423 = vpop.f32.mrb[0].mxu0
    %v424 = vadd.f32 0.0, %v423
    %425 = vdwg.mxu0
    %426 = vmatprep.subr.mxu0 %v47
    %427 = vmatpush1.msra.mxu0 %v46
    %428 = vmatprep.subr.mxu0 %v55
    %429 = vmatpush1.msra.mxu0 %v54
    %430 = vmatprep.subr.mxu0 %v63
    %431 = vmatpush1.msra.mxu0 %v62
    %432 = vmatprep.subr.mxu0 %v71
    %433 = vmatpush1.msra.mxu0 %v70
    %434 = vmatprep.subr.mxu0 %v79
    %435 = vmatpush1.msra.mxu0 %v78
    %436 = vmatprep.subr.mxu0 %v87
    %437 = vmatpush1.msra.mxu0 %v86
    %438 = vmatprep.subr.mxu0 %v95
    %439 = vmatpush1.msra.mxu0 %v94
    %440 = vmatprep.subr.mxu0 %v103
    %441 = vmatpush1.msra.mxu0 %v102
    %442 = vmatprep.subr.mxu0 %v111
    %443 = vmatpush1.msra.mxu0 %v110
    %444 = vmatprep.subr.mxu0 %v119
    %445 = vmatpush1.msra.mxu0 %v118
    %446 = vmatprep.subr.mxu0 %v127
    %447 = vmatpush1.msra.mxu0 %v126
    %448 = vmatprep.subr.mxu0 %v135
    %449 = vmatpush1.msra.mxu0 %v134
    %450 = vmatprep.subr.mxu0 %v143
    %451 = vmatpush1.msra.mxu0 %v142
    %452 = vmatprep.subr.mxu0 %v151
    %453 = vmatpush1.msra.mxu0 %v150
    %454 = vmatprep.subr.mxu0 %v159
    %455 = vmatpush1.msra.mxu0 %v158
    %456 = vmatprep.subr.mxu0 %v167
    %457 = vmatpush1.msra.mxu0 %v166
    %458 = vmatprep.subr.mxu0 %v175
    %459 = vmatpush1.msra.mxu0 %v174
    %460 = vmatprep.subr.mxu0 %v211
    %461 = vmatpush1.msra.mxu0 %v208
    %462 = vmatprep.subr.mxu0 0.0
    %463 = vmatpush1.msra.mxu0 0.0
    %464 = vmatprep.subr.mxu0 0.0
    %465 = vmatpush1.msra.mxu0 0.0
    %466 = vmatprep.subr.mxu0 0.0
    %467 = vmatpush1.msra.mxu0 0.0
    %468 = vmatprep.subr.mxu0 0.0
    %469 = vmatpush1.msra.mxu0 0.0
    %470 = vmatprep.subr.mxu0 0.0
    %471 = vmatpush1.msra.mxu0 0.0
    %472 = vmatprep.subr.mxu0 0.0
    %473 = vmatpush1.msra.mxu0 0.0
    %474 = vmatprep.subr.mxu0 0.0
    %475 = vmatpush1.msra.mxu0 0.0
    %476 = vmatprep.subr.mxu0 0.0
    %477 = vmatpush1.msra.mxu0 0.0
    %478 = vmatprep.subr.mxu0 0.0
    %479 = vmatpush1.msra.mxu0 0.0
    %480 = vmatprep.subr.mxu0 0.0
    %481 = vmatpush1.msra.mxu0 0.0
    %482 = vmatprep.subr.mxu0 0.0
    %483 = vmatpush1.msra.mxu0 0.0
    %484 = vmatprep.subr.mxu0 0.0
    %485 = vmatpush1.msra.mxu0 0.0
    %486 = vmatprep.subr.mxu0 0.0
    %487 = vmatpush1.msra.mxu0 0.0
    %488 = vmatprep.subr.mxu0 0.0
    %489 = vmatpush1.msra.mxu0 0.0
    %490 = vmatprep.mubr.f32.mxu0 %v186
    %491 = vmatmul.mubr.f32.gmra.mrb[0].mxu0 %v38
    %v492 = vpop.f32.mrb[0].mxu0
    %v493 = vadd.f32 0.0, %v492
    %v494 = vpop.f32.mrb[0].mxu0
    %v495 = vadd.f32 0.0, %v494
    %496 = vdwg.mxu0
    %497 = vst [vmem:[#allocation7] sm:$0xff] %v280
    %498 = vst [vmem:[#allocation7 + $0x8] sm:$0xff] %v282
    %499 = vst [vmem:[#allocation7 + $0x10] sm:$0xff] %v351
    %500 = vst [vmem:[#allocation7 + $0x18] sm:$0xff] %v353
    %501 = vst [vmem:[#allocation7 + $0x20] sm:$0xff] %v422
    %502 = vst [vmem:[#allocation7 + $0x28] sm:$0xff] %v424
    %503 = vst [vmem:[#allocation7 + $0x30] sm:$0xff] %v493
    %504 = vst [vmem:[#allocation7 + $0x38] sm:$0xff] %v495
    // Predicated region
    $region18: #{tpu_custom_call.1} parent=1 // pred_check
      _
    $region19: #{tpu_custom_call.1} parent=1 // pred_check_branch
      %506 = sbr.rel (0) target = $region21
    $region20: #{tpu_custom_call.1} parent=1 // pred_region
      %s508 = ssub.s32 1024, 1024
      %509 = vsyncadd [#allocation4], %s508
      %s511 = sshll.u32 [#allocation7], 4
      %s512 = int_to_ptr.vmem [resolvable:$true] %s511
      %514 = dma.vmem_to_hbm [thread:$0]  %s512, 1024, %s2, [#allocation4]
    $region21: #{tpu_custom_call.1} parent=1 // pred_fallthru
      _
    // Predicated region
    $region22: #{tpu_custom_call.1} parent=1 // pred_check
      _
    $region23: #{tpu_custom_call.1} parent=1 // pred_check_branch
      %516 = sbr.rel (0) target = $region25
    $region24: #{tpu_custom_call.1} parent=1 // pred_region
      %517 = dma.done [#allocation4], 1024
    $region25: #{tpu_custom_call.1} parent=1 // pred_fallthru
      _
    %518 = vsyncpa [#allocation3], 1
    %519 = vsyncpa [#allocation6], 1
    %520 = vsyncpa [#allocation4], 1

</llo_original>
